<compile_context>
chip_gen: v5e
topology: v5e:2x2
jax: 0.10.0
libtpu: 0.0.40
codegen_flags: <defaults>
</compile_context>

<pallas_src>
import jax
import jax.numpy as jnp
from jax.experimental import pallas as pl
from jax.experimental.pallas import tpu as pltpu


def _lr_kernel(phi_ref, b_ref, x_ref, o_ref):
    # phi_ref / b_ref: (1,) f32 scalars in SMEM.
    phi = phi_ref[0]
    b = b_ref[0]
    z = x_ref[...] * phi + b
    # Exact sigmoid: exp goes to the EUP slot, the divide is a few VPU ops,
    # all hidden under the HBM<->VMEM DMA (the kernel is memory-bound).
    o_ref[...] = 1.0 / (1.0 + jnp.exp(-z))


def _round_up(v, m):
    return ((v + m - 1) // m) * m


def lr_classifier_forward(
    x,
    phi,
    b,
    *,
    lane_cols=1024,               # lane-dense last dim (multiple of 128)
    target_block_bytes=4 << 20,   # ~4 MiB per block -> ~16 MiB VMEM double-buffered
    vmem_limit_bytes=48 << 20,    # < 64 MiB physical on v7x, lifts v5e's 16 MiB default
):
    """sigmoid(x * phi + b) elementwise over any shape; phi, b are (1,) scalars."""
    assert lane_cols % 128 == 0, "output last dim must be a multiple of 128"
    orig_shape = x.shape
    x = x.astype(jnp.float32)
    phi = phi.astype(jnp.float32).reshape((1,))
    b = b.astype(jnp.float32).reshape((1,))

    n = x.size
    itemsize = 4  # f32

    # Flatten + pad into a lane-dense (rows, lane_cols) slab; rows multiple of 8.
    rows_needed = -(-n // lane_cols)
    rows = max(8, _round_up(rows_needed, 8))
    n_pad = rows * lane_cols
    x2 = jnp.pad(x.reshape(-1), (0, n_pad - n)).reshape(rows, lane_cols)

    # Largest row-tile that keeps one block <= target_block_bytes (multiple of 8).
    tile_rows = target_block_bytes // (lane_cols * itemsize)
    tile_rows = max(8, min(rows, (tile_rows // 8) * 8))

    grid = (pl.cdiv(rows, tile_rows),)

    cost = pl.CostEstimate(
        flops=4 * n_pad,
        transcendentals=n_pad,
        bytes_accessed=2 * n_pad * itemsize,
    )

    y2 = pl.pallas_call(
        _lr_kernel,
        out_shape=jax.ShapeDtypeStruct((rows, lane_cols), jnp.float32),
        grid=grid,
        in_specs=[
            pl.BlockSpec(memory_space=pltpu.MemorySpace.SMEM),    # Phi_
            pl.BlockSpec(memory_space=pltpu.MemorySpace.SMEM),    # B_
            pl.BlockSpec((tile_rows, lane_cols), lambda i: (i, 0)),
        ],
        out_specs=pl.BlockSpec((tile_rows, lane_cols), lambda i: (i, 0)),
        compiler_params=pltpu.CompilerParams(
            dimension_semantics=("parallel",),
            vmem_limit_bytes=vmem_limit_bytes,
        ),
        cost_estimate=cost,
    )(phi, b, x2)

    return y2.reshape(-1)[:n].reshape(orig_shape)


if __name__ == "__main__":
    key = jax.random.PRNGKey(0)
    kx, kphi, kb = jax.random.split(key, 3)

    # Small, deliberately ragged shape (last dim not a multiple of 128) to
    # exercise the lane-dense flatten/pad path.  The module is elementwise so
    # any shape is consistent with it.
    x = jax.random.normal(kx, (16, 96), dtype=jnp.float32)
    # Deterministic "randn(1)" parameter init.
    phi = jax.random.normal(kphi, (1,), dtype=jnp.float32)
    b = jax.random.normal(kb, (1,), dtype=jnp.float32)

    y = lr_classifier_forward(x, phi, b)
    y = jax.block_until_ready(y)

    # Reference check against plain JAX (exact sigmoid in kernel now, so a
    # tight tolerance is safe).
    y_ref = jax.nn.sigmoid(x * phi[0] + b[0])
    assert y.shape == y_ref.shape
    assert jnp.allclose(y, y_ref, atol=1e-4, rtol=1e-4)

    print("KERNEL_OK")
</pallas_src>

<mosaic_0001>
module attributes {stable_mosaic.version = 11 : i64} {
  func.func @_lr_kernel(%arg0: i32, %arg1: memref<1xf32, #tpu.memory_space<smem>>, %arg2: memref<1xf32, #tpu.memory_space<smem>>, %arg3: memref<8x1024xf32, #tpu.memory_space<vmem>>, %arg4: memref<8x1024xf32, #tpu.memory_space<vmem>>) attributes {dimension_semantics = [#tpu.dimension_semantics<parallel>], iteration_bounds = array<i64: 1>, scalar_prefetch = 0 : i64, scratch_operands = 0 : i64, tpu.core_type = #tpu.core_type<tc>, window_params = [{transform_indices = @transform_0, window_bounds = array<i64: 1>}, {transform_indices = @transform_1, window_bounds = array<i64: 1>}, {transform_indices = @transform_2, window_bounds = array<i64: 8, 1024>}, {transform_indices = @transform_3, window_bounds = array<i64: 8, 1024>}]} {
    %c0 = arith.constant 0 : index
    %0 = memref.load %arg1[%c0] : memref<1xf32, #tpu.memory_space<smem>>
    %c0_0 = arith.constant 0 : index
    %1 = memref.load %arg2[%c0_0] : memref<1xf32, #tpu.memory_space<smem>>
    %c0_1 = arith.constant 0 : index
    %c0_2 = arith.constant 0 : index
    %2 = vector.load %arg3[%c0_1, %c0_2] : memref<8x1024xf32, #tpu.memory_space<vmem>>, vector<8x1024xf32>
    %3 = vector.broadcast %0 : f32 to vector<8x1024xf32>
    %4 = arith.mulf %2, %3 : vector<8x1024xf32>
    %5 = vector.broadcast %1 : f32 to vector<8x1024xf32>
    %6 = arith.addf %4, %5 : vector<8x1024xf32>
    %cst = arith.constant 0.000000e+00 : f32
    %7 = vector.broadcast %cst : f32 to vector<8x1024xf32>
    %8 = arith.subf %7, %6 : vector<8x1024xf32>
    %9 = math.exp %8 : vector<8x1024xf32>
    %cst_3 = arith.constant 1.000000e+00 : f32
    %10 = vector.broadcast %cst_3 : f32 to vector<8x1024xf32>
    %11 = arith.addf %10, %9 : vector<8x1024xf32>
    %cst_4 = arith.constant 1.000000e+00 : f32
    %12 = vector.broadcast %cst_4 : f32 to vector<8x1024xf32>
    %13 = arith.divf %12, %11 : vector<8x1024xf32>
    %c0_5 = arith.constant 0 : index
    %c0_6 = arith.constant 0 : index
    %14 = vector.load %arg4[%c0_5, %c0_6] : memref<8x1024xf32, #tpu.memory_space<vmem>>, vector<8x1024xf32>
    tpu.vector_store %arg4[%c0_5, %c0_6], %13 {strides = array<i32>} : memref<8x1024xf32, #tpu.memory_space<vmem>>, vector<8x1024xf32>,
    return
  }
  func.func @transform_0(%arg0: i32) -> i32 {
    %c0_i32 = arith.constant 0 : i32
    %c0_i32_0 = arith.constant 0 : i32
    return %c0_i32 : i32
  }
  func.func @transform_1(%arg0: i32) -> i32 {
    %c0_i32 = arith.constant 0 : i32
    %c0_i32_0 = arith.constant 0 : i32
    return %c0_i32 : i32
  }
  func.func @transform_2(%arg0: i32) -> (i32, i32) {
    %c0_i32 = arith.constant 0 : i32
    %c0_i32_0 = arith.constant 0 : i32
    return %arg0, %c0_i32 : i32, i32
  }
  func.func @transform_3(%arg0: i32) -> (i32, i32) {
    %c0_i32 = arith.constant 0 : i32
    %c0_i32_0 = arith.constant 0 : i32
    return %arg0, %c0_i32 : i32, i32
  }
}

</mosaic_0001>

<llo_original>
// kernel: tpu_custom_call.1
$region0: #{tpu_custom_call.1}
  #allocation0 [shape = 'u32[]', space=smem, size = 0x4, offset = 0x4, fixed_abs, tag = 'smem constant byte address 0x4 - core index']
  #allocation1 [shape = 'u32[72,128]{1,0:T(1,128)}', space=vmem, size = 0x9000, scoped, tag = 'internal scratch']
  #allocation2 [shape = 'f32[1]{0:T(128)S(6)}', space=smem, size = 0x200, scoped, tag = 'scoped memory for tpu_custom_call.1']
  #allocation3 [shape = 'f32[1]{0:T(128)S(6)}', space=smem, size = 0x200, scoped, tag = 'scoped memory for tpu_custom_call.1']
  %s0 = inlined_call_operand.<no memory space> [shape: f32[1], index: 0, kind: input, shape index: {}]
  %s1 = inlined_call_operand.<no memory space> [shape: f32[1], index: 1, kind: input, shape index: {}]
  %s2 = inlined_call_operand.hbm [shape: f32[8,1024], index: 2, kind: input, shape index: {}]
  %s3 = inlined_call_operand.hbm [shape: f32[8,1024], index: 3, kind: output, shape index: {}]
  %s4 = sld [smem:[#allocation0]]
  $region26: #{tpu_custom_call.1} parent=0
    _
  %s6 = ssub.s32 1, %s4
  %s7 = scalar_select 0, %s6, %s4
  %8 = sst [smem:[#allocation2]] %s0
  %9 = sst [smem:[#allocation3]] %s1
  $region1: #{tpu_custom_call.1} parent=0
    #allocation4 [shape = 'u8[32768]{0}', space=vmem, size = 0x8000, scoped, tag = 'input window, operand 2, single buffered']
    #allocation5 [shape = 's32[1]{0}', space=sflag, size = 0x4, scoped, tag = 'scoped memory for tpu_custom_call.1']
    #allocation6 [shape = 's32[1]{0}', space=sflag, size = 0x4, scoped, tag = 'scoped memory for tpu_custom_call.1']
    #allocation7 [shape = 'u8[32768]{0}', space=vmem, size = 0x8000, scoped, tag = 'output window, operand 0, single buffered']
    %10 = vsyncpa [#allocation5], 0
    %11 = vsyncpa [#allocation6], 0
    // Predicated region
    $region2: #{tpu_custom_call.1} parent=1 // pred_check
      _
    $region3: #{tpu_custom_call.1} parent=1 // pred_check_branch
      %13 = sbr.rel (0) target = $region5
    $region4: #{tpu_custom_call.1} parent=1 // pred_region
      _
    $region5: #{tpu_custom_call.1} parent=1 // pred_fallthru
      _
    // Predicated region
    $region6: #{tpu_custom_call.1} parent=1 // pred_check
      _
    $region7: #{tpu_custom_call.1} parent=1 // pred_check_branch
      %15 = sbr.rel (0) target = $region9
    $region8: #{tpu_custom_call.1} parent=1 // pred_region
      _
    $region9: #{tpu_custom_call.1} parent=1 // pred_fallthru
      _
    // Predicated region
    $region10: #{tpu_custom_call.1} parent=1 // pred_check
      _
    $region11: #{tpu_custom_call.1} parent=1 // pred_check_branch
      %17 = sbr.rel (0) target = $region13
    $region12: #{tpu_custom_call.1} parent=1 // pred_region
      %19 = vsyncadd [#allocation5], 0
      %s21 = sshll.u32 %s2, 4
      %s22 = int_to_ptr.hbm [resolvable:$true] %s21
      %s23 = sshll.u32 [#allocation4], 4
      %s24 = int_to_ptr.vmem [resolvable:$true] %s23
      %26 = dma.hbm_to_vmem [thread:$0]  %s22, 1024, %s24, [#allocation5]
    $region13: #{tpu_custom_call.1} parent=1 // pred_fallthru
      _
    // Predicated region
    $region14: #{tpu_custom_call.1} parent=1 // pred_check
      _
    $region15: #{tpu_custom_call.1} parent=1 // pred_check_branch
      %28 = sbr.rel (0) target = $region17
    $region16: #{tpu_custom_call.1} parent=1 // pred_region
      %30 = dma.done [#allocation5], 1024
    $region17: #{tpu_custom_call.1} parent=1 // pred_fallthru
      _
    %s31 = sld [smem:[#allocation2]]
    %s32 = sld [smem:[#allocation3]]
    %v33 = vld [vmem:[#allocation4] sm:$0xff]
    %v34 = vld [vmem:[#allocation4 + $0x8] sm:$0xff]
    %v35 = vld [vmem:[#allocation4 + $0x10] sm:$0xff]
    %v36 = vld [vmem:[#allocation4 + $0x18] sm:$0xff]
    %v37 = vld [vmem:[#allocation4 + $0x20] sm:$0xff]
    %v38 = vld [vmem:[#allocation4 + $0x28] sm:$0xff]
    %v39 = vld [vmem:[#allocation4 + $0x30] sm:$0xff]
    %v40 = vld [vmem:[#allocation4 + $0x38] sm:$0xff]
    %v41 = vstv %s31
    %v42 = vmul.f32 %v33, %v41
    %v43 = vmul.f32 %v34, %v41
    %v44 = vmul.f32 %v35, %v41
    %v45 = vmul.f32 %v36, %v41
    %v46 = vmul.f32 %v37, %v41
    %v47 = vmul.f32 %v38, %v41
    %v48 = vmul.f32 %v39, %v41
    %v49 = vmul.f32 %v40, %v41
    %v50 = vstv %s32
    %v51 = vadd.f32 %v42, %v50
    %v52 = vadd.f32 %v43, %v50
    %v53 = vadd.f32 %v44, %v50
    %v54 = vadd.f32 %v45, %v50
    %v55 = vadd.f32 %v46, %v50
    %v56 = vadd.f32 %v47, %v50
    %v57 = vadd.f32 %v48, %v50
    %v58 = vadd.f32 %v49, %v50
    %v59 = vsub.f32 0.0, %v51
    %v60 = vsub.f32 0.0, %v52
    %v61 = vsub.f32 0.0, %v53
    %v62 = vsub.f32 0.0, %v54
    %v63 = vsub.f32 0.0, %v55
    %v64 = vsub.f32 0.0, %v56
    %v65 = vsub.f32 0.0, %v57
    %v66 = vsub.f32 0.0, %v58
    %v67 = vmul.f32 %v59, 1.442695
    %v68 = vpow.pop %v67
    %v69 = vmul.f32 %v60, 1.442695
    %v70 = vpow.pop %v69
    %v71 = vmul.f32 %v61, 1.442695
    %v72 = vpow.pop %v71
    %v73 = vmul.f32 %v62, 1.442695
    %v74 = vpow.pop %v73
    %v75 = vmul.f32 %v63, 1.442695
    %v76 = vpow.pop %v75
    %v77 = vmul.f32 %v64, 1.442695
    %v78 = vpow.pop %v77
    %v79 = vmul.f32 %v65, 1.442695
    %v80 = vpow.pop %v79
    %v81 = vmul.f32 %v66, 1.442695
    %v82 = vpow.pop %v81
    %v83 = vadd.f32 %v68, 1.0
    %v84 = vadd.f32 %v70, 1.0
    %v85 = vadd.f32 %v72, 1.0
    %v86 = vadd.f32 %v74, 1.0
    %v87 = vadd.f32 %v76, 1.0
    %v88 = vadd.f32 %v78, 1.0
    %v89 = vadd.f32 %v80, 1.0
    %v90 = vadd.f32 %v82, 1.0
    %v91 = vrcp.pop %v83
    %v92 = vmul.f32 %v83, %v91
    %v93 = vsub.f32 1.0, %v92
    %v94 = vmul.f32 %v91, %v93
    %v95 = vadd.f32 %v91, %v94
    %vm96 = vweird.f32 %v83
    %vm97 = vweird.f32 %v91
    %vm98 = vmor %vm96, %vm97
    %v99 = vsel %vm98, %v91, %v95
    %v100 = vand.u32 2147483647, %v83
    %vm101 = vcmp.eq.f32.partialorder %v100, 8.507059e+37
    %v102 = vand.u32 %v83, 2147483648
    %v103 = vor.u32 1.1754944e-38, %v102
    %v104 = vsel %vm101, %v103, %v99
    %v105 = vmul.f32 1.0, %v104
    %v106 = vrcp.pop %v84
    %v107 = vmul.f32 %v84, %v106
    %v108 = vsub.f32 1.0, %v107
    %v109 = vmul.f32 %v106, %v108
    %v110 = vadd.f32 %v106, %v109
    %vm111 = vweird.f32 %v84
    %vm112 = vweird.f32 %v106
    %vm113 = vmor %vm111, %vm112
    %v114 = vsel %vm113, %v106, %v110
    %v115 = vand.u32 2147483647, %v84
    %vm116 = vcmp.eq.f32.partialorder %v115, 8.507059e+37
    %v117 = vand.u32 %v84, 2147483648
    %v118 = vor.u32 1.1754944e-38, %v117
    %v119 = vsel %vm116, %v118, %v114
    %v120 = vmul.f32 1.0, %v119
    %v121 = vrcp.pop %v85
    %v122 = vmul.f32 %v85, %v121
    %v123 = vsub.f32 1.0, %v122
    %v124 = vmul.f32 %v121, %v123
    %v125 = vadd.f32 %v121, %v124
    %vm126 = vweird.f32 %v85
    %vm127 = vweird.f32 %v121
    %vm128 = vmor %vm126, %vm127
    %v129 = vsel %vm128, %v121, %v125
    %v130 = vand.u32 2147483647, %v85
    %vm131 = vcmp.eq.f32.partialorder %v130, 8.507059e+37
    %v132 = vand.u32 %v85, 2147483648
    %v133 = vor.u32 1.1754944e-38, %v132
    %v134 = vsel %vm131, %v133, %v129
    %v135 = vmul.f32 1.0, %v134
    %v136 = vrcp.pop %v86
    %v137 = vmul.f32 %v86, %v136
    %v138 = vsub.f32 1.0, %v137
    %v139 = vmul.f32 %v136, %v138
    %v140 = vadd.f32 %v136, %v139
    %vm141 = vweird.f32 %v86
    %vm142 = vweird.f32 %v136
    %vm143 = vmor %vm141, %vm142
    %v144 = vsel %vm143, %v136, %v140
    %v145 = vand.u32 2147483647, %v86
    %vm146 = vcmp.eq.f32.partialorder %v145, 8.507059e+37
    %v147 = vand.u32 %v86, 2147483648
    %v148 = vor.u32 1.1754944e-38, %v147
    %v149 = vsel %vm146, %v148, %v144
    %v150 = vmul.f32 1.0, %v149
    %v151 = vrcp.pop %v87
    %v152 = vmul.f32 %v87, %v151
    %v153 = vsub.f32 1.0, %v152
    %v154 = vmul.f32 %v151, %v153
    %v155 = vadd.f32 %v151, %v154
    %vm156 = vweird.f32 %v87
    %vm157 = vweird.f32 %v151
    %vm158 = vmor %vm156, %vm157
    %v159 = vsel %vm158, %v151, %v155
    %v160 = vand.u32 2147483647, %v87
    %vm161 = vcmp.eq.f32.partialorder %v160, 8.507059e+37
    %v162 = vand.u32 %v87, 2147483648
    %v163 = vor.u32 1.1754944e-38, %v162
    %v164 = vsel %vm161, %v163, %v159
    %v165 = vmul.f32 1.0, %v164
    %v166 = vrcp.pop %v88
    %v167 = vmul.f32 %v88, %v166
    %v168 = vsub.f32 1.0, %v167
    %v169 = vmul.f32 %v166, %v168
    %v170 = vadd.f32 %v166, %v169
    %vm171 = vweird.f32 %v88
    %vm172 = vweird.f32 %v166
    %vm173 = vmor %vm171, %vm172
    %v174 = vsel %vm173, %v166, %v170
    %v175 = vand.u32 2147483647, %v88
    %vm176 = vcmp.eq.f32.partialorder %v175, 8.507059e+37
    %v177 = vand.u32 %v88, 2147483648
    %v178 = vor.u32 1.1754944e-38, %v177
    %v179 = vsel %vm176, %v178, %v174
    %v180 = vmul.f32 1.0, %v179
    %v181 = vrcp.pop %v89
    %v182 = vmul.f32 %v89, %v181
    %v183 = vsub.f32 1.0, %v182
    %v184 = vmul.f32 %v181, %v183
    %v185 = vadd.f32 %v181, %v184
    %vm186 = vweird.f32 %v89
    %vm187 = vweird.f32 %v181
    %vm188 = vmor %vm186, %vm187
    %v189 = vsel %vm188, %v181, %v185
    %v190 = vand.u32 2147483647, %v89
    %vm191 = vcmp.eq.f32.partialorder %v190, 8.507059e+37
    %v192 = vand.u32 %v89, 2147483648
    %v193 = vor.u32 1.1754944e-38, %v192
    %v194 = vsel %vm191, %v193, %v189
    %v195 = vmul.f32 1.0, %v194
    %v196 = vrcp.pop %v90
    %v197 = vmul.f32 %v90, %v196
    %v198 = vsub.f32 1.0, %v197
    %v199 = vmul.f32 %v196, %v198
    %v200 = vadd.f32 %v196, %v199
    %vm201 = vweird.f32 %v90
    %vm202 = vweird.f32 %v196
    %vm203 = vmor %vm201, %vm202
    %v204 = vsel %vm203, %v196, %v200
    %v205 = vand.u32 2147483647, %v90
    %vm206 = vcmp.eq.f32.partialorder %v205, 8.507059e+37
    %v207 = vand.u32 %v90, 2147483648
    %v208 = vor.u32 1.1754944e-38, %v207
    %v209 = vsel %vm206, %v208, %v204
    %v210 = vmul.f32 1.0, %v209
    %211 = vst [vmem:[#allocation7] sm:$0xff] %v105
    %212 = vst [vmem:[#allocation7 + $0x8] sm:$0xff] %v120
    %213 = vst [vmem:[#allocation7 + $0x10] sm:$0xff] %v135
    %214 = vst [vmem:[#allocation7 + $0x18] sm:$0xff] %v150
    %215 = vst [vmem:[#allocation7 + $0x20] sm:$0xff] %v165
    %216 = vst [vmem:[#allocation7 + $0x28] sm:$0xff] %v180
    %217 = vst [vmem:[#allocation7 + $0x30] sm:$0xff] %v195
    %218 = vst [vmem:[#allocation7 + $0x38] sm:$0xff] %v210
    // Predicated region
    $region18: #{tpu_custom_call.1} parent=1 // pred_check
      _
    $region19: #{tpu_custom_call.1} parent=1 // pred_check_branch
      %220 = sbr.rel (0) target = $region21
    $region20: #{tpu_custom_call.1} parent=1 // pred_region
      %222 = vsyncadd [#allocation6], 0
      %s224 = sshll.u32 [#allocation7], 4
      %s225 = int_to_ptr.vmem [resolvable:$true] %s224
      %s226 = sshll.u32 %s3, 4
      %s227 = int_to_ptr.hbm [resolvable:$true] %s226
      %229 = dma.vmem_to_hbm [thread:$0]  %s225, 1024, %s227, [#allocation6]
    $region21: #{tpu_custom_call.1} parent=1 // pred_fallthru
      _
    // Predicated region
    $region22: #{tpu_custom_call.1} parent=1 // pred_check
      _
    $region23: #{tpu_custom_call.1} parent=1 // pred_check_branch
      %231 = sbr.rel (0) target = $region25
    $region24: #{tpu_custom_call.1} parent=1 // pred_region
      %233 = dma.done [#allocation6], 1024
    $region25: #{tpu_custom_call.1} parent=1 // pred_fallthru
      _
    %234 = vsyncpa [#allocation5], 1
    %235 = vsyncpa [#allocation6], 1

</llo_original>
